<compile_context>
chip_gen: v5e
topology: v5e:2x2
jax: 0.10.0
libtpu: 0.0.40
codegen_flags: <defaults>
</compile_context>

<pallas_src>
import jax
import jax.numpy as jnp
from jax.experimental import pallas as pl
from jax.experimental.pallas import tpu as pltpu


def self_att_kernel(x_ref, w_ref, c_ref, o_ref):
    x = x_ref[...]                                            # (bb, E) fp32
    c = c_ref[...]                                            # (3, E)  fp32: b_fold / gamma / beta
    # Folded GEMM: y = x @ (wk^T @ wp^T).  MXU runs in the weight dtype
    # (bf16 on v6e/v7x), accumulation in fp32.
    y = jnp.dot(x.astype(w_ref.dtype), w_ref[...],
                preferred_element_type=jnp.float32)
    # residual + folded bias (fp32 elementwise)
    r = x + y + c[0:1, :]
    # One-pass LayerNorm (torch default eps=1e-5, biased variance):
    #   var = E[r^2] - mean^2
    mean = jnp.mean(r, axis=-1, keepdims=True)
    var = jnp.maximum(jnp.mean(r * r, axis=-1, keepdims=True) - mean * mean, 0.0)
    o_ref[...] = (r - mean) * jax.lax.rsqrt(var + 1e-5) * c[1:2, :] + c[2:3, :]


def self_att_forward(x, params, *, num_heads, block_b=256,
                     matmul_dtype=jnp.bfloat16):
    """Pallas forward.  `params` keeps the full module parameter set for
    interface parity; w_q / w_mlp are dead (softmax over k_len==1 is 1)."""
    del num_heads  # per-head score is a no-op (softmax over a single key)
    B, E = x.shape
    wk, bk, wq, bq, w_mlp, wp, bp, gamma, beta = params
    del wq, bq, w_mlp  # dead branch, has no effect on the output

    # Fold w_k and proj into one weight / one bias (plain-JAX, done once).
    w_fold = (wk.T @ wp.T).astype(matmul_dtype)               # (E, E)
    b_fold = bk @ wp.T + bp                                   # (E,)
    consts = jnp.stack([b_fold, gamma, beta], axis=0).astype(jnp.float32)  # (3, E)

    # Batch tile: large for MXU / pipeline utilization, multiple of 8
    # (sublane), but don't over-pad tiny batches.
    bb = int(min(block_b, max(8, pl.cdiv(B, 8) * 8)))
    Bp = int(pl.cdiv(B, bb)) * bb
    xp = jnp.pad(x, ((0, Bp - B), (0, 0))) if Bp != B else x

    out = pl.pallas_call(
        self_att_kernel,
        out_shape=jax.ShapeDtypeStruct((Bp, E), jnp.float32),
        grid_spec=pltpu.PrefetchScalarGridSpec(
            num_scalar_prefetch=0,
            grid=(Bp // bb,),
            in_specs=[
                pl.BlockSpec((bb, E), lambda i: (i, 0)),      # x tile
                pl.BlockSpec((E, E), lambda i: (0, 0)),       # folded weight (resident)
                pl.BlockSpec((3, E), lambda i: (0, 0)),       # b_fold / gamma / beta
            ],
            out_specs=pl.BlockSpec((bb, E), lambda i: (i, 0)),
        ),
        compiler_params=pltpu.CompilerParams(
            dimension_semantics=("parallel",),                # megacore / v7x dual-TC sharding
            vmem_limit_bytes=32 * 1024 * 1024,                # plenty; fits v7x 64 MiB easily
        ),
    )(xp, w_fold, consts)
    return out[:B] if Bp != B else out


def self_att_ref(x, params, *, num_heads):
    """Pure-JAX reference mirroring the full PyTorch Attention('mlp') path
    (including the score branch, to validate that it is indeed a no-op)."""
    B, E = x.shape
    hd = E // num_heads
    wk, bk, wq, bq, w_mlp, wp, bp, gamma, beta = params
    kx = x @ wk.T + bk                          # (B, E)
    qx = x @ wq.T + bq
    kx3 = kx.reshape(B, num_heads, hd)
    qx3 = qx.reshape(B, num_heads, hd)
    kq = jnp.concatenate([kx3, qx3], axis=-1)   # (B, nh, 2*hd)
    score = jnp.tanh(kq @ w_mlp)                # (B, nh)   [q_len = k_len = 1]
    p = jax.nn.softmax(score[..., None], axis=-1)[..., 0]   # softmax over k_len==1
    att = (p[..., None] * kx3).reshape(B, E)    # concat heads
    y = att @ wp.T + bp                         # proj; dropout(eval) = identity
    r = x + y
    mean = r.mean(-1, keepdims=True)
    var = ((r - mean) ** 2).mean(-1, keepdims=True)
    return (r - mean) / jnp.sqrt(var + 1e-5) * gamma + beta


if __name__ == "__main__":
    hidden_dim, num_heads = 32, 4
    E = hidden_dim * 2          # embed_dim of inner Attention / LayerNorm width
    hd = E // num_heads
    B = 512                     # enough rows for a >1 grid and full MXU tiles

    key = jax.random.PRNGKey(0)
    ks = jax.random.split(key, 9)
    x = jax.random.normal(ks[0], (B, E), jnp.float32)

    # Deterministic synthetic parameters (shapes from the module's __init__)
    wk = jax.random.normal(ks[1], (E, E), jnp.float32) * 0.1
    bk = jax.random.normal(ks[2], (E,), jnp.float32) * 0.05
    wq = jax.random.normal(ks[3], (E, E), jnp.float32) * 0.1
    bq = jax.random.normal(ks[4], (E,), jnp.float32) * 0.05
    w_mlp = jax.random.uniform(ks[5], (2 * hd,), jnp.float32, -0.25, 0.25)
    wp = jax.random.normal(ks[6], (E, E), jnp.float32) * 0.1
    bp = jax.random.normal(ks[7], (E,), jnp.float32) * 0.05
    gamma = jnp.ones((E,), jnp.float32)
    beta = jnp.zeros((E,), jnp.float32)
    params = (wk, bk, wq, bq, w_mlp, wp, bp, gamma, beta)

    ref = self_att_ref(x, params, num_heads=num_heads)

    # fp32 matmul path: validates the dead-code removal + GEMM folding tightly.
    out_f32 = self_att_forward(x, params, num_heads=num_heads,
                               block_b=256, matmul_dtype=jnp.float32)
    out_f32 = jax.block_until_ready(out_f32)
    assert out_f32.shape == (B, E)
    assert jnp.allclose(out_f32, ref, atol=1e-4, rtol=1e-4), "fp32 mismatch vs reference"

    # bf16 MXU path (default, the fast path on v6e/v7x); fp32 LayerNorm.
    out_bf16 = self_att_forward(x, params, num_heads=num_heads, block_b=256)
    out_bf16 = jax.block_until_ready(out_bf16)
    assert out_bf16.shape == (B, E)
    assert jnp.allclose(out_bf16, ref, atol=2e-2, rtol=2e-2), "bf16 mismatch vs reference"

    # TODO(synk): nn.Dropout(p=0.1) is treated as eval-mode identity (no RNG mask).
    print("KERNEL_OK")
</pallas_src>

<mosaic_0001>
module attributes {stable_mosaic.version = 11 : i64} {
  func.func @self_att_kernel(%arg0: i32, %arg1: memref<256x64xf32, #tpu.memory_space<vmem>>, %arg2: memref<64x64xf32, #tpu.memory_space<vmem>>, %arg3: memref<3x64xf32, #tpu.memory_space<vmem>>, %arg4: memref<256x64xf32, #tpu.memory_space<vmem>>) attributes {dimension_semantics = [#tpu.dimension_semantics<parallel>], iteration_bounds = array<i64: 2>, scalar_prefetch = 0 : i64, scratch_operands = 0 : i64, tpu.core_type = #tpu.core_type<tc>, window_params = [{transform_indices = @transform_0, window_bounds = array<i64: 256, 64>}, {pipeline_mode = #tpu.pipeline_mode<synchronous>, transform_indices = @transform_1, window_bounds = array<i64: 64, 64>}, {pipeline_mode = #tpu.pipeline_mode<synchronous>, transform_indices = @transform_2, window_bounds = array<i64: 3, 64>}, {transform_indices = @transform_3, window_bounds = array<i64: 256, 64>}]} {
    %c0 = arith.constant 0 : index
    %c0_0 = arith.constant 0 : index
    %0 = vector.load %arg1[%c0, %c0_0] : memref<256x64xf32, #tpu.memory_space<vmem>>, vector<256x64xf32>
    %c0_1 = arith.constant 0 : index
    %c0_2 = arith.constant 0 : index
    %1 = vector.load %arg3[%c0_1, %c0_2] : memref<3x64xf32, #tpu.memory_space<vmem>>, vector<3x64xf32>
    %c0_3 = arith.constant 0 : index
    %c0_4 = arith.constant 0 : index
    %2 = vector.load %arg2[%c0_3, %c0_4] : memref<64x64xf32, #tpu.memory_space<vmem>>, vector<64x64xf32>
    %cst = arith.constant dense<0.000000e+00> : vector<256x64xf32>
    %3 = tpu.matmul %0, %2, %cst {dimension_numbers = #tpu.dot_dimension_numbers<[1], [0], [0], [1], [0, 0, 1, 1], [], []>} : vector<256x64xf32>, vector<64x64xf32>, vector<256x64xf32> -> vector<256x64xf32>
    %4 = arith.addf %0, %3 : vector<256x64xf32>
    %5 = vector.extract_strided_slice %1 {offsets = [0, 0], sizes = [1, 64], strides = [1, 1]} : vector<3x64xf32> to vector<1x64xf32>
    %6 = vector.broadcast %5 : vector<1x64xf32> to vector<256x64xf32>
    %7 = arith.addf %4, %6 : vector<256x64xf32>
    %cst_5 = arith.constant dense<0.000000e+00> : vector<256xf32>
    %8 = vector.multi_reduction <add>, %7, %cst_5 [1] : vector<256x64xf32> to vector<256xf32>
    %9 = vector.shape_cast %8 : vector<256xf32> to vector<256x1xf32>
    %cst_6 = arith.constant 6.400000e+01 : f32
    %10 = vector.broadcast %cst_6 : f32 to vector<256x1xf32>
    %11 = arith.divf %9, %10 : vector<256x1xf32>
    %12 = arith.mulf %7, %7 : vector<256x64xf32>
    %cst_7 = arith.constant dense<0.000000e+00> : vector<256xf32>
    %13 = vector.multi_reduction <add>, %12, %cst_7 [1] : vector<256x64xf32> to vector<256xf32>
    %14 = vector.shape_cast %13 : vector<256xf32> to vector<256x1xf32>
    %cst_8 = arith.constant 6.400000e+01 : f32
    %15 = vector.broadcast %cst_8 : f32 to vector<256x1xf32>
    %16 = arith.divf %14, %15 : vector<256x1xf32>
    %17 = arith.mulf %11, %11 : vector<256x1xf32>
    %18 = arith.subf %16, %17 : vector<256x1xf32>
    %cst_9 = arith.constant 0.000000e+00 : f32
    %19 = vector.broadcast %cst_9 : f32 to vector<256x1xf32>
    %20 = arith.maximumf %18, %19 : vector<256x1xf32>
    %21 = vector.broadcast %11 : vector<256x1xf32> to vector<256x64xf32>
    %22 = arith.subf %7, %21 : vector<256x64xf32>
    %cst_10 = arith.constant 9.99999974E-6 : f32
    %23 = vector.broadcast %cst_10 : f32 to vector<256x1xf32>
    %24 = arith.addf %20, %23 : vector<256x1xf32>
    %25 = math.rsqrt %24 : vector<256x1xf32>
    %26 = vector.broadcast %25 : vector<256x1xf32> to vector<256x64xf32>
    %27 = arith.mulf %22, %26 : vector<256x64xf32>
    %28 = vector.extract_strided_slice %1 {offsets = [1, 0], sizes = [1, 64], strides = [1, 1]} : vector<3x64xf32> to vector<1x64xf32>
    %29 = vector.broadcast %28 : vector<1x64xf32> to vector<256x64xf32>
    %30 = arith.mulf %27, %29 : vector<256x64xf32>
    %31 = vector.extract_strided_slice %1 {offsets = [2, 0], sizes = [1, 64], strides = [1, 1]} : vector<3x64xf32> to vector<1x64xf32>
    %32 = vector.broadcast %31 : vector<1x64xf32> to vector<256x64xf32>
    %33 = arith.addf %30, %32 : vector<256x64xf32>
    %c0_11 = arith.constant 0 : index
    %c0_12 = arith.constant 0 : index
    %34 = vector.load %arg4[%c0_11, %c0_12] : memref<256x64xf32, #tpu.memory_space<vmem>>, vector<256x64xf32>
    tpu.vector_store %arg4[%c0_11, %c0_12], %33 {strides = array<i32>} : memref<256x64xf32, #tpu.memory_space<vmem>>, vector<256x64xf32>,
    return
  }
  func.func @transform_0(%arg0: i32) -> (i32, i32) {
    %c0_i32 = arith.constant 0 : i32
    %c0_i32_0 = arith.constant 0 : i32
    return %arg0, %c0_i32 : i32, i32
  }
  func.func @transform_1(%arg0: i32) -> (i32, i32) {
    %c0_i32 = arith.constant 0 : i32
    %c0_i32_0 = arith.constant 0 : i32
    %c0_i32_1 = arith.constant 0 : i32
    return %c0_i32, %c0_i32_0 : i32, i32
  }
  func.func @transform_2(%arg0: i32) -> (i32, i32) {
    %c0_i32 = arith.constant 0 : i32
    %c0_i32_0 = arith.constant 0 : i32
    %c0_i32_1 = arith.constant 0 : i32
    return %c0_i32, %c0_i32_0 : i32, i32
  }
  func.func @transform_3(%arg0: i32) -> (i32, i32) {
    %c0_i32 = arith.constant 0 : i32
    %c0_i32_0 = arith.constant 0 : i32
    return %arg0, %c0_i32 : i32, i32
  }
}

</mosaic_0001>

<llo_original>
// kernel: tpu_custom_call.1
$region0: #{tpu_custom_call.1}
  #allocation0 [shape = 'u32[]', space=smem, size = 0x4, offset = 0x4, fixed_abs, tag = 'smem constant byte address 0x4 - core index']
  #allocation1 [shape = 'u32[72,128]{1,0:T(1,128)}', space=vmem, size = 0x9000, scoped, tag = 'internal scratch']
  %s0 = inlined_call_operand.vmem [shape: f32[512,64], index: 0, kind: input, shape index: {}]
  %s1 = inlined_call_operand.vmem [shape: f32[64,64], index: 1, kind: input, shape index: {}]
  %s2 = inlined_call_operand.vmem [shape: f32[3,64], index: 2, kind: input, shape index: {}]
  %s3 = inlined_call_operand.vmem [shape: f32[512,64], index: 3, kind: output, shape index: {}]
  %s4 = sld [smem:[#allocation0]]
  $region45: #{tpu_custom_call.1} parent=0
    _
  %s6 = ssub.s32 1, %s4
  %s7 = scalar_select 0, %s6, %s4
  loop: start=0, step=1, limit=4
  $region2: #{tpu_custom_call.1} parent=0 // loop_pre_header
    _
  $region3: #{tpu_custom_call.1} parent=0 // loop_header
    %s9 = sphi 0, %s13
    %p10 = scmp.ge.s32.totalorder %s9, 4
    %s19 = sphi 0, %s21
    %s22 = sphi 0, %s19
    %s23 = sphi 0, %s22
    %s39 = sphi 0, %s23
    %s43 = sphi 0, %s43
    %s45 = sphi 0, %s43
    %s46 = sphi 0, %s45
    %s60 = sphi 0, %s46
    %s64 = sphi 0, %s64
    %s66 = sphi 0, %s64
    %s67 = sphi 0, %s66
    %s81 = sphi 0, %s67
    %s87 = sphi 0, %s89
    %s90 = sphi 0, %s87
    %s91 = sphi 0, %s90
    %s107 = sphi 0, %s91
  $region4: #{tpu_custom_call.1} parent=0 // loop_header_branch
    %12 = sbr.rel (%p10) target = $region8
  $region5: #{tpu_custom_call.1} parent=0 // loop_body
    %s14 = ssub.s32 %s9, 1
    %s15 = ssub.s32 %s9, 2
    %s16 = sadd.s32 %s9, 1
    %s17 = ssub.s32 %s9, %s16
    %p18 = scmp.eq.s32.totalorder %s17, 0
    %s20 = sadd.s32 %s19, 1
    %s21 = scalar_select %p18, %s19, %s20
    %p24 = pneg %p18
    %p25 = scmp.eq.s32.totalorder %s9, 1
    %p26 = por %p24, %p25
    %p27 = scmp.ne.s32.totalorder %s19, %s22
    %p28 = scmp.eq.s32.totalorder %s9, 0
    %p29 = por %p27, %p28
    %p30 = scmp.ne.s32.totalorder %s19, %s22
    %p31 = scmp.eq.s32.totalorder %s14, 1
    %p32 = por %p30, %p31
    %p33 = scmp.ne.s32.totalorder %s22, %s23
    %p34 = scmp.eq.s32.totalorder %s14, 0
    %p35 = por %p33, %p34
    %p36 = scmp.ne.s32.totalorder %s22, %s23
    %p37 = scmp.eq.s32.totalorder %s15, 1
    %p38 = por %p36, %p37
    %p40 = scmp.ne.s32.totalorder %s23, %s39
    %p41 = scmp.eq.s32.totalorder %s15, 0
    %p42 = por %p40, %p41
    %s44 = sadd.s32 %s43, 1
    %p47 = scmp.eq.s32.totalorder %s9, 1
    %p48 = scmp.ne.s32.totalorder %s43, %s45
    %p49 = scmp.eq.s32.totalorder %s9, 0
    %p50 = por %p48, %p49
    %p51 = scmp.ne.s32.totalorder %s43, %s45
    %p52 = scmp.eq.s32.totalorder %s14, 1
    %p53 = por %p51, %p52
    %p54 = scmp.ne.s32.totalorder %s45, %s46
    %p55 = scmp.eq.s32.totalorder %s14, 0
    %p56 = por %p54, %p55
    %p57 = scmp.ne.s32.totalorder %s45, %s46
    %p58 = scmp.eq.s32.totalorder %s15, 1
    %p59 = por %p57, %p58
    %p61 = scmp.ne.s32.totalorder %s46, %s60
    %p62 = scmp.eq.s32.totalorder %s15, 0
    %p63 = por %p61, %p62
    %s65 = sadd.s32 %s64, 1
    %p68 = scmp.eq.s32.totalorder %s9, 1
    %p69 = scmp.ne.s32.totalorder %s64, %s66
    %p70 = scmp.eq.s32.totalorder %s9, 0
    %p71 = por %p69, %p70
    %p72 = scmp.ne.s32.totalorder %s64, %s66
    %p73 = scmp.eq.s32.totalorder %s14, 1
    %p74 = por %p72, %p73
    %p75 = scmp.ne.s32.totalorder %s66, %s67
    %p76 = scmp.eq.s32.totalorder %s14, 0
    %p77 = por %p75, %p76
    %p78 = scmp.ne.s32.totalorder %s66, %s67
    %p79 = scmp.eq.s32.totalorder %s15, 1
    %p80 = por %p78, %p79
    %p82 = scmp.ne.s32.totalorder %s67, %s81
    %p83 = scmp.eq.s32.totalorder %s15, 0
    %p84 = por %p82, %p83
    %s85 = ssub.s32 %s9, %s16
    %p86 = scmp.eq.s32.totalorder %s85, 0
    %s88 = sadd.s32 %s87, 1
    %s89 = scalar_select %p86, %s87, %s88
    %p92 = pneg %p86
    %p93 = scmp.eq.s32.totalorder %s9, 1
    %p94 = por %p92, %p93
    %p95 = scmp.ne.s32.totalorder %s87, %s90
    %p96 = scmp.eq.s32.totalorder %s9, 0
    %p97 = por %p95, %p96
    %p98 = scmp.ne.s32.totalorder %s87, %s90
    %p99 = scmp.eq.s32.totalorder %s14, 1
    %p100 = por %p98, %p99
    %p101 = scmp.ne.s32.totalorder %s90, %s91
    %p102 = scmp.eq.s32.totalorder %s14, 0
    %p103 = por %p101, %p102
    %p104 = scmp.ne.s32.totalorder %s90, %s91
    %p105 = scmp.eq.s32.totalorder %s15, 1
    %p106 = por %p104, %p105
    %p108 = scmp.ne.s32.totalorder %s91, %s107
    %p109 = scmp.eq.s32.totalorder %s15, 0
    %p110 = por %p108, %p109
    %p111 = scmp.le.s32.totalorder 1, %s9
    %p112 = scmp.lt.s32.totalorder %s9, 3
    %p113 = pnand %p111, %p112
    %p114 = pneg %p113
    // Predicated region
    $region9: #{tpu_custom_call.1} parent=5 // pred_check
      _
    $region10: #{tpu_custom_call.1} parent=5 // pred_check_branch
      %116 = sbr.rel (%p113) target = $region12
    $region11: #{tpu_custom_call.1} parent=5 // pred_region
      %s117 = ssub.s32 %s9, 1
      // Predicated region
      $region13: #{tpu_custom_call.1} parent=11 // pred_check
        %p118 = pneg %p56
      $region14: #{tpu_custom_call.1} parent=11 // pred_check_branch
        %120 = sbr.rel (%p118) target = $region16
      $region15: #{tpu_custom_call.1} parent=11 // pred_region
        _
      $region16: #{tpu_custom_call.1} parent=11 // pred_fallthru
        _
      // Predicated region
      $region17: #{tpu_custom_call.1} parent=11 // pred_check
        %p121 = pneg %p77
      $region18: #{tpu_custom_call.1} parent=11 // pred_check_branch
        %123 = sbr.rel (%p121) target = $region20
      $region19: #{tpu_custom_call.1} parent=11 // pred_region
        _
      $region20: #{tpu_custom_call.1} parent=11 // pred_fallthru
        _
    $region12: #{tpu_custom_call.1} parent=5 // pred_fallthru
      _
    %p124 = scmp.lt.s32.totalorder %s9, 2
    // Predicated region
    $region21: #{tpu_custom_call.1} parent=5 // pred_check
      %p125 = pneg %p124
    $region22: #{tpu_custom_call.1} parent=5 // pred_check_branch
      %127 = sbr.rel (%p125) target = $region24
    $region23: #{tpu_custom_call.1} parent=5 // pred_region
      // Predicated region
      $region25: #{tpu_custom_call.1} parent=23 // pred_check
        %p128 = pneg %p29
      $region26: #{tpu_custom_call.1} parent=23 // pred_check_branch
        %130 = sbr.rel (%p128) target = $region28
      $region27: #{tpu_custom_call.1} parent=23 // pred_region
        %s131 = smul.u32 32, %s9
        %p132 = scmp.lt.s32.totalorder %s131, 63
        %s133 = scalar_select %p132, %s131, 63
        %s134 = smul.addr %s133, 8
        %s135 = scalar_lea.vmem %s0, %s134
        %s136 = smul.u32 32, %s9
      $region28: #{tpu_custom_call.1} parent=23 // pred_fallthru
        _
    $region24: #{tpu_custom_call.1} parent=5 // pred_fallthru
      _
    %p137 = scmp.le.s32.totalorder 1, %s9
    %p138 = scmp.lt.s32.totalorder %s9, 3
    %p139 = pnand %p137, %p138
    %p140 = pneg %p139
    // Predicated region
    $region29: #{tpu_custom_call.1} parent=5 // pred_check
      _
    $region30: #{tpu_custom_call.1} parent=5 // pred_check_branch
      %142 = sbr.rel (%p139) target = $region32
    $region31: #{tpu_custom_call.1} parent=5 // pred_region
      %s143 = ssub.s32 %s9, 1
      %s144 = smul.u32 32, %s14
      %p145 = scmp.lt.s32.totalorder %s144, 63
      %s146 = scalar_select %p145, %s144, 63
      %s147 = smul.addr %s146, 8
      %s148 = scalar_lea.vmem %s0, %s147
      %p149 = pneg %p35
      %p150 = pneg %p32
      %p151 = pneg %p56
      %p152 = pneg %p53
      %p153 = pneg %p77
      %p154 = pneg %p74
      %p155 = pneg %p103
      %p156 = pneg %p100
      %s157 = smul.u32 32, %s14
      %p158 = scmp.lt.s32.totalorder %s157, 63
      %s159 = scalar_select %p158, %s157, 63
      %s160 = smul.addr %s159, 8
      %s161 = scalar_lea.vmem %s3, %s160
      %s162 = smul.u32 32, %s14
      %p163 = scmp.lt.s32.totalorder %s162, 63
      %s164 = scalar_select %p163, %s162, 63
      %s165 = smul.addr %s164, 8
      %s166 = scalar_lea.vmem %s0, %s165
      %s167 = smul.u32 32, %s14
      %s168 = smul.u32 32, %s14
      %p169 = scmp.lt.s32.totalorder %s168, 63
      %s170 = scalar_select %p169, %s168, 63
      %s171 = smul.addr %s170, 8
      %s172 = scalar_lea.vmem %s3, %s171
      %s173 = smul.u32 32, %s14
      %v174 = vld [vmem:[%s166] sm:$0xff]
      %v175 = vld [vmem:[%s166 + $0x8] sm:$0xff]
      %v176 = vld [vmem:[%s166 + $0x10] sm:$0xff]
      %v177 = vld [vmem:[%s166 + $0x18] sm:$0xff]
      %v178 = vld [vmem:[%s166 + $0x20] sm:$0xff]
      %v179 = vld [vmem:[%s166 + $0x28] sm:$0xff]
      %v180 = vld [vmem:[%s166 + $0x30] sm:$0xff]
      %v181 = vld [vmem:[%s166 + $0x38] sm:$0xff]
      %v182 = vld [vmem:[%s166 + $0x40] sm:$0xff]
      %v183 = vld [vmem:[%s166 + $0x48] sm:$0xff]
      %v184 = vld [vmem:[%s166 + $0x50] sm:$0xff]
      %v185 = vld [vmem:[%s166 + $0x58] sm:$0xff]
      %v186 = vld [vmem:[%s166 + $0x60] sm:$0xff]
      %v187 = vld [vmem:[%s166 + $0x68] sm:$0xff]
      %v188 = vld [vmem:[%s166 + $0x70] sm:$0xff]
      %v189 = vld [vmem:[%s166 + $0x78] sm:$0xff]
      %v190 = vld [vmem:[%s166 + $0x80] sm:$0xff]
      %v191 = vld [vmem:[%s166 + $0x88] sm:$0xff]
      %v192 = vld [vmem:[%s166 + $0x90] sm:$0xff]
      %v193 = vld [vmem:[%s166 + $0x98] sm:$0xff]
      %v194 = vld [vmem:[%s166 + $0xa0] sm:$0xff]
      %v195 = vld [vmem:[%s166 + $0xa8] sm:$0xff]
      %v196 = vld [vmem:[%s166 + $0xb0] sm:$0xff]
      %v197 = vld [vmem:[%s166 + $0xb8] sm:$0xff]
      %v198 = vld [vmem:[%s166 + $0xc0] sm:$0xff]
      %v199 = vld [vmem:[%s166 + $0xc8] sm:$0xff]
      %v200 = vld [vmem:[%s166 + $0xd0] sm:$0xff]
      %v201 = vld [vmem:[%s166 + $0xd8] sm:$0xff]
      %v202 = vld [vmem:[%s166 + $0xe0] sm:$0xff]
      %v203 = vld [vmem:[%s166 + $0xe8] sm:$0xff]
      %v204 = vld [vmem:[%s166 + $0xf0] sm:$0xff]
      %v205 = vld [vmem:[%s166 + $0xf8] sm:$0xff]
      %v206 = vld [vmem:[%s2] sm:$0x7]
      %v207 = vld [vmem:[%s1] sm:$0xff]
      %v208 = vld [vmem:[%s1 + $0x8] sm:$0xff]
      %v209 = vld [vmem:[%s1 + $0x10] sm:$0xff]
      %v210 = vld [vmem:[%s1 + $0x18] sm:$0xff]
      %v211 = vld [vmem:[%s1 + $0x20] sm:$0xff]
      %v212 = vld [vmem:[%s1 + $0x28] sm:$0xff]
      %v213 = vld [vmem:[%s1 + $0x30] sm:$0xff]
      %v214 = vld [vmem:[%s1 + $0x38] sm:$0xff]
      %vm215 = vcmask 523264
      %v217 = vsel %vm215, %v174, 0
      %v220 = vsel %vm215, %v175, 0
      %v223 = vsel %vm215, %v176, 0
      %v226 = vsel %vm215, %v177, 0
      %v229 = vsel %vm215, %v178, 0
      %v232 = vsel %vm215, %v179, 0
      %v235 = vsel %vm215, %v180, 0
      %v238 = vsel %vm215, %v181, 0
      %v241 = vsel %vm215, %v182, 0
      %v244 = vsel %vm215, %v183, 0
      %v247 = vsel %vm215, %v184, 0
      %v250 = vsel %vm215, %v185, 0
      %v253 = vsel %vm215, %v186, 0
      %v256 = vsel %vm215, %v187, 0
      %v259 = vsel %vm215, %v188, 0
      %v262 = vsel %vm215, %v189, 0
      %v265 = vsel %vm215, %v190, 0
      %v268 = vsel %vm215, %v191, 0
      %v271 = vsel %vm215, %v192, 0
      %v274 = vsel %vm215, %v193, 0
      %v277 = vsel %vm215, %v194, 0
      %v280 = vsel %vm215, %v195, 0
      %v283 = vsel %vm215, %v196, 0
      %v286 = vsel %vm215, %v197, 0
      %v289 = vsel %vm215, %v198, 0
      %v292 = vsel %vm215, %v199, 0
      %v295 = vsel %vm215, %v200, 0
      %v298 = vsel %vm215, %v201, 0
      %v301 = vsel %vm215, %v202, 0
      %v304 = vsel %vm215, %v203, 0
      %v307 = vsel %vm215, %v204, 0
      %v310 = vsel %vm215, %v205, 0
      %312 = vmatpush.msra.mxu0 0.0
      %313 = vmatpush.msra.mxu0 0.0
      %314 = vmatpush.msra.mxu0 0.0
      %315 = vmatpush.msra.mxu0 0.0
      %316 = vmatpush.msra.mxu0 0.0
      %317 = vmatpush.msra.mxu0 0.0
      %318 = vmatpush.msra.mxu0 0.0
      %319 = vmatpush.msra.mxu0 0.0
      %320 = vmatpush.msra.mxu0 %v214
      %321 = vmatpush.msra.mxu0 %v213
      %322 = vmatpush.msra.mxu0 %v212
      %323 = vmatpush.msra.mxu0 %v211
      %324 = vmatpush.msra.mxu0 %v210
      %325 = vmatpush.msra.mxu0 %v209
      %326 = vmatpush.msra.mxu0 %v208
      %327 = vmatpush.msra.mxu0 %v207
      %328 = vmatmul.f32.gmra.mxu0 %v217
      %v329 = vpop.f32.mrf.mxu0
      %v330 = vadd.f32 0.0, %v329
      %331 = vmatmul.f32.gmra.mxu0 %v220
      %v332 = vpop.f32.mrf.mxu0
      %v333 = vadd.f32 0.0, %v332
      %334 = vmatmul.f32.gmra.mxu0 %v223
      %v335 = vpop.f32.mrf.mxu0
      %v336 = vadd.f32 0.0, %v335
      %337 = vmatmul.f32.gmra.mxu0 %v226
      %v338 = vpop.f32.mrf.mxu0
      %v339 = vadd.f32 0.0, %v338
      %340 = vmatmul.f32.gmra.mxu0 %v229
      %v341 = vpop.f32.mrf.mxu0
      %v342 = vadd.f32 0.0, %v341
      %343 = vmatmul.f32.gmra.mxu0 %v232
      %v344 = vpop.f32.mrf.mxu0
      %v345 = vadd.f32 0.0, %v344
      %346 = vmatmul.f32.gmra.mxu0 %v235
      %v347 = vpop.f32.mrf.mxu0
      %v348 = vadd.f32 0.0, %v347
      %349 = vmatmul.f32.gmra.mxu0 %v238
      %v350 = vpop.f32.mrf.mxu0
      %v351 = vadd.f32 0.0, %v350
      %352 = vmatmul.f32.gmra.mxu0 %v241
      %v353 = vpop.f32.mrf.mxu0
      %v354 = vadd.f32 0.0, %v353
      %355 = vmatmul.f32.gmra.mxu0 %v244
      %v356 = vpop.f32.mrf.mxu0
      %v357 = vadd.f32 0.0, %v356
      %358 = vmatmul.f32.gmra.mxu0 %v247
      %v359 = vpop.f32.mrf.mxu0
      %v360 = vadd.f32 0.0, %v359
      %361 = vmatmul.f32.gmra.mxu0 %v250
      %v362 = vpop.f32.mrf.mxu0
      %v363 = vadd.f32 0.0, %v362
      %364 = vmatmul.f32.gmra.mxu0 %v253
      %v365 = vpop.f32.mrf.mxu0
      %v366 = vadd.f32 0.0, %v365
      %367 = vmatmul.f32.gmra.mxu0 %v256
      %v368 = vpop.f32.mrf.mxu0
      %v369 = vadd.f32 0.0, %v368
      %370 = vmatmul.f32.gmra.mxu0 %v259
      %v371 = vpop.f32.mrf.mxu0
      %v372 = vadd.f32 0.0, %v371
      %373 = vmatmul.f32.gmra.mxu0 %v262
      %v374 = vpop.f32.mrf.mxu0
      %v375 = vadd.f32 0.0, %v374
      %376 = vmatmul.f32.gmra.mxu0 %v265
      %v377 = vpop.f32.mrf.mxu0
      %v378 = vadd.f32 0.0, %v377
      %379 = vmatmul.f32.gmra.mxu0 %v268
      %v380 = vpop.f32.mrf.mxu0
      %v381 = vadd.f32 0.0, %v380
      %382 = vmatmul.f32.gmra.mxu0 %v271
      %v383 = vpop.f32.mrf.mxu0
      %v384 = vadd.f32 0.0, %v383
      %385 = vmatmul.f32.gmra.mxu0 %v274
      %v386 = vpop.f32.mrf.mxu0
      %v387 = vadd.f32 0.0, %v386
      %388 = vmatmul.f32.gmra.mxu0 %v277
      %v389 = vpop.f32.mrf.mxu0
      %v390 = vadd.f32 0.0, %v389
      %391 = vmatmul.f32.gmra.mxu0 %v280
      %v392 = vpop.f32.mrf.mxu0
      %v393 = vadd.f32 0.0, %v392
      %394 = vmatmul.f32.gmra.mxu0 %v283
      %v395 = vpop.f32.mrf.mxu0
      %v396 = vadd.f32 0.0, %v395
      %397 = vmatmul.f32.gmra.mxu0 %v286
      %v398 = vpop.f32.mrf.mxu0
      %v399 = vadd.f32 0.0, %v398
      %400 = vmatmul.f32.gmra.mxu0 %v289
      %v401 = vpop.f32.mrf.mxu0
      %v402 = vadd.f32 0.0, %v401
      %403 = vmatmul.f32.gmra.mxu0 %v292
      %v404 = vpop.f32.mrf.mxu0
      %v405 = vadd.f32 0.0, %v404
      %406 = vmatmul.f32.gmra.mxu0 %v295
      %v407 = vpop.f32.mrf.mxu0
      %v408 = vadd.f32 0.0, %v407
      %409 = vmatmul.f32.gmra.mxu0 %v298
      %v410 = vpop.f32.mrf.mxu0
      %v411 = vadd.f32 0.0, %v410
      %412 = vmatmul.f32.gmra.mxu0 %v301
      %v413 = vpop.f32.mrf.mxu0
      %v414 = vadd.f32 0.0, %v413
      %415 = vmatmul.f32.gmra.mxu0 %v304
      %v416 = vpop.f32.mrf.mxu0
      %v417 = vadd.f32 0.0, %v416
      %418 = vmatmul.f32.gmra.mxu0 %v307
      %v419 = vpop.f32.mrf.mxu0
      %v420 = vadd.f32 0.0, %v419
      %421 = vmatmul.f32.gmra.mxu0 %v310
      %v422 = vpop.f32.mrf.mxu0
      %v423 = vadd.f32 0.0, %v422
      %424 = vdwg.mxu0
      %v425 = vadd.f32 %v174, %v330
      %v426 = vadd.f32 %v175, %v333
      %v427 = vadd.f32 %v176, %v336
      %v428 = vadd.f32 %v177, %v339
      %v429 = vadd.f32 %v178, %v342
      %v430 = vadd.f32 %v179, %v345
      %v431 = vadd.f32 %v180, %v348
      %v432 = vadd.f32 %v181, %v351
      %v433 = vadd.f32 %v182, %v354
      %v434 = vadd.f32 %v183, %v357
      %v435 = vadd.f32 %v184, %v360
      %v436 = vadd.f32 %v185, %v363
      %v437 = vadd.f32 %v186, %v366
      %v438 = vadd.f32 %v187, %v369
      %v439 = vadd.f32 %v188, %v372
      %v440 = vadd.f32 %v189, %v375
      %v441 = vadd.f32 %v190, %v378
      %v442 = vadd.f32 %v191, %v381
      %v443 = vadd.f32 %v192, %v384
      %v444 = vadd.f32 %v193, %v387
      %v445 = vadd.f32 %v194, %v390
      %v446 = vadd.f32 %v195, %v393
      %v447 = vadd.f32 %v196, %v396
      %v448 = vadd.f32 %v197, %v399
      %v449 = vadd.f32 %v198, %v402
      %v450 = vadd.f32 %v199, %v405
      %v451 = vadd.f32 %v200, %v408
      %v452 = vadd.f32 %v201, %v411
      %v453 = vadd.f32 %v202, %v414
      %v454 = vadd.f32 %v203, %v417
      %v455 = vadd.f32 %v204, %v420
      %v456 = vadd.f32 %v205, %v423
      %v457 = vperm.slane %v206, 0
      %v458 = vadd.f32 %v425, %v457
      %v459 = vadd.f32 %v426, %v457
      %v460 = vadd.f32 %v427, %v457
      %v461 = vadd.f32 %v428, %v457
      %v462 = vadd.f32 %v429, %v457
      %v463 = vadd.f32 %v430, %v457
      %v464 = vadd.f32 %v431, %v457
      %v465 = vadd.f32 %v432, %v457
      %v466 = vadd.f32 %v433, %v457
      %v467 = vadd.f32 %v434, %v457
      %v468 = vadd.f32 %v435, %v457
      %v469 = vadd.f32 %v436, %v457
      %v470 = vadd.f32 %v437, %v457
      %v471 = vadd.f32 %v438, %v457
      %v472 = vadd.f32 %v439, %v457
      %v473 = vadd.f32 %v440, %v457
      %v474 = vadd.f32 %v441, %v457
      %v475 = vadd.f32 %v442, %v457
      %v476 = vadd.f32 %v443, %v457
      %v477 = vadd.f32 %v444, %v457
      %v478 = vadd.f32 %v445, %v457
      %v479 = vadd.f32 %v446, %v457
      %v480 = vadd.f32 %v447, %v457
      %v481 = vadd.f32 %v448, %v457
      %v482 = vadd.f32 %v449, %v457
      %v483 = vadd.f32 %v450, %v457
      %v484 = vadd.f32 %v451, %v457
      %v485 = vadd.f32 %v452, %v457
      %v486 = vadd.f32 %v453, %v457
      %v487 = vadd.f32 %v454, %v457
      %v488 = vadd.f32 %v455, %v457
      %v489 = vadd.f32 %v456, %v457
      %v490 = vsel %vm215, %v458, 0.0
      %491 = vadd.xlane.f32.xlu0 %v490
      %v492 = vpop.xlane.xlu0 %491
      %v493 = vsel %vm215, %v459, 0.0
      %494 = vadd.xlane.f32.xlu0 %v493
      %v495 = vpop.xlane.xlu0 %494
      %v496 = vsel %vm215, %v460, 0.0
      %497 = vadd.xlane.f32.xlu0 %v496
      %v498 = vpop.xlane.xlu0 %497
      %v499 = vsel %vm215, %v461, 0.0
      %500 = vadd.xlane.f32.xlu0 %v499
      %v501 = vpop.xlane.xlu0 %500
      %v502 = vsel %vm215, %v462, 0.0
      %503 = vadd.xlane.f32.xlu0 %v502
      %v504 = vpop.xlane.xlu0 %503
      %v505 = vsel %vm215, %v463, 0.0
      %506 = vadd.xlane.f32.xlu0 %v505
      %v507 = vpop.xlane.xlu0 %506
      %v508 = vsel %vm215, %v464, 0.0
      %509 = vadd.xlane.f32.xlu0 %v508
      %v510 = vpop.xlane.xlu0 %509
      %v511 = vsel %vm215, %v465, 0.0
      %512 = vadd.xlane.f32.xlu0 %v511
      %v513 = vpop.xlane.xlu0 %512
      %v514 = vsel %vm215, %v466, 0.0
      %515 = vadd.xlane.f32.xlu0 %v514
      %v516 = vpop.xlane.xlu0 %515
      %v517 = vsel %vm215, %v467, 0.0
      %518 = vadd.xlane.f32.xlu0 %v517
      %v519 = vpop.xlane.xlu0 %518
      %v520 = vsel %vm215, %v468, 0.0
      %521 = vadd.xlane.f32.xlu0 %v520
      %v522 = vpop.xlane.xlu0 %521
      %v523 = vsel %vm215, %v469, 0.0
      %524 = vadd.xlane.f32.xlu0 %v523
      %v525 = vpop.xlane.xlu0 %524
      %v526 = vsel %vm215, %v470, 0.0
      %527 = vadd.xlane.f32.xlu0 %v526
      %v528 = vpop.xlane.xlu0 %527
      %v529 = vsel %vm215, %v471, 0.0
      %530 = vadd.xlane.f32.xlu0 %v529
      %v531 = vpop.xlane.xlu0 %530
      %v532 = vsel %vm215, %v472, 0.0
      %533 = vadd.xlane.f32.xlu0 %v532
      %v534 = vpop.xlane.xlu0 %533
      %v535 = vsel %vm215, %v473, 0.0
      %536 = vadd.xlane.f32.xlu0 %v535
      %v537 = vpop.xlane.xlu0 %536
      %v538 = vsel %vm215, %v474, 0.0
      %539 = vadd.xlane.f32.xlu0 %v538
      %v540 = vpop.xlane.xlu0 %539
      %v541 = vsel %vm215, %v475, 0.0
      %542 = vadd.xlane.f32.xlu0 %v541
      %v543 = vpop.xlane.xlu0 %542
      %v544 = vsel %vm215, %v476, 0.0
      %545 = vadd.xlane.f32.xlu0 %v544
      %v546 = vpop.xlane.xlu0 %545
      %v547 = vsel %vm215, %v477, 0.0
      %548 = vadd.xlane.f32.xlu0 %v547
      %v549 = vpop.xlane.xlu0 %548
      %v550 = vsel %vm215, %v478, 0.0
      %551 = vadd.xlane.f32.xlu0 %v550
      %v552 = vpop.xlane.xlu0 %551
      %v553 = vsel %vm215, %v479, 0.0
      %554 = vadd.xlane.f32.xlu0 %v553
      %v555 = vpop.xlane.xlu0 %554
      %v556 = vsel %vm215, %v480, 0.0
      %557 = vadd.xlane.f32.xlu0 %v556
      %v558 = vpop.xlane.xlu0 %557
      %v559 = vsel %vm215, %v481, 0.0
      %560 = vadd.xlane.f32.xlu0 %v559
      %v561 = vpop.xlane.xlu0 %560
      %v562 = vsel %vm215, %v482, 0.0
      %563 = vadd.xlane.f32.xlu0 %v562
      %v564 = vpop.xlane.xlu0 %563
      %v565 = vsel %vm215, %v483, 0.0
      %566 = vadd.xlane.f32.xlu0 %v565
      %v567 = vpop.xlane.xlu0 %566
      %v568 = vsel %vm215, %v484, 0.0
      %569 = vadd.xlane.f32.xlu0 %v568
      %v570 = vpop.xlane.xlu0 %569
      %v571 = vsel %vm215, %v485, 0.0
      %572 = vadd.xlane.f32.xlu0 %v571
      %v573 = vpop.xlane.xlu0 %572
      %v574 = vsel %vm215, %v486, 0.0
      %575 = vadd.xlane.f32.xlu0 %v574
      %v576 = vpop.xlane.xlu0 %575
      %v577 = vsel %vm215, %v487, 0.0
      %578 = vadd.xlane.f32.xlu0 %v577
      %v579 = vpop.xlane.xlu0 %578
      %v580 = vsel %vm215, %v488, 0.0
      %581 = vadd.xlane.f32.xlu0 %v580
      %v582 = vpop.xlane.xlu0 %581
      %v583 = vsel %vm215, %v489, 0.0
      %584 = vadd.xlane.f32.xlu0 %v583
      %v585 = vpop.xlane.xlu0 %584
      %v586 = vrcp.pop 64.0
      %v587 = vmul.f32 64.0, %v586
      %v588 = vsub.f32 1.0, %v587
      %v589 = vmul.f32 %v586, %v588
      %v590 = vadd.f32 %v586, %v589
      %vm591 = vweird.f32 %v586
      %v592 = vsel %vm591, %v586, %v590
      %v593 = vmul.f32 %v492, %v592
      %v594 = vmul.f32 %v495, %v592
      %v595 = vmul.f32 %v498, %v592
      %v596 = vmul.f32 %v501, %v592
      %v597 = vmul.f32 %v504, %v592
      %v598 = vmul.f32 %v507, %v592
      %v599 = vmul.f32 %v510, %v592
      %v600 = vmul.f32 %v513, %v592
      %v601 = vmul.f32 %v516, %v592
      %v602 = vmul.f32 %v519, %v592
      %v603 = vmul.f32 %v522, %v592
      %v604 = vmul.f32 %v525, %v592
      %v605 = vmul.f32 %v528, %v592
      %v606 = vmul.f32 %v531, %v592
      %v607 = vmul.f32 %v534, %v592
      %v608 = vmul.f32 %v537, %v592
      %v609 = vmul.f32 %v540, %v592
      %v610 = vmul.f32 %v543, %v592
      %v611 = vmul.f32 %v546, %v592
      %v612 = vmul.f32 %v549, %v592
      %v613 = vmul.f32 %v552, %v592
      %v614 = vmul.f32 %v555, %v592
      %v615 = vmul.f32 %v558, %v592
      %v616 = vmul.f32 %v561, %v592
      %v617 = vmul.f32 %v564, %v592
      %v618 = vmul.f32 %v567, %v592
      %v619 = vmul.f32 %v570, %v592
      %v620 = vmul.f32 %v573, %v592
      %v621 = vmul.f32 %v576, %v592
      %v622 = vmul.f32 %v579, %v592
      %v623 = vmul.f32 %v582, %v592
      %v624 = vmul.f32 %v585, %v592
      %v625 = vmul.f32 %v458, %v458
      %v626 = vmul.f32 %v459, %v459
      %v627 = vmul.f32 %v460, %v460
      %v628 = vmul.f32 %v461, %v461
      %v629 = vmul.f32 %v462, %v462
      %v630 = vmul.f32 %v463, %v463
      %v631 = vmul.f32 %v464, %v464
      %v632 = vmul.f32 %v465, %v465
      %v633 = vmul.f32 %v466, %v466
      %v634 = vmul.f32 %v467, %v467
      %v635 = vmul.f32 %v468, %v468
      %v636 = vmul.f32 %v469, %v469
      %v637 = vmul.f32 %v470, %v470
      %v638 = vmul.f32 %v471, %v471
      %v639 = vmul.f32 %v472, %v472
      %v640 = vmul.f32 %v473, %v473
      %v641 = vmul.f32 %v474, %v474
      %v642 = vmul.f32 %v475, %v475
      %v643 = vmul.f32 %v476, %v476
      %v644 = vmul.f32 %v477, %v477
      %v645 = vmul.f32 %v478, %v478
      %v646 = vmul.f32 %v479, %v479
      %v647 = vmul.f32 %v480, %v480
      %v648 = vmul.f32 %v481, %v481
      %v649 = vmul.f32 %v482, %v482
      %v650 = vmul.f32 %v483, %v483
      %v651 = vmul.f32 %v484, %v484
      %v652 = vmul.f32 %v485, %v485
      %v653 = vmul.f32 %v486, %v486
      %v654 = vmul.f32 %v487, %v487
      %v655 = vmul.f32 %v488, %v488
      %v656 = vmul.f32 %v489, %v489
      %v657 = vsel %vm215, %v625, 0.0
      %658 = vadd.xlane.f32.xlu0 %v657
      %v659 = vpop.xlane.xlu0 %658
      %v660 = vsel %vm215, %v626, 0.0
      %661 = vadd.xlane.f32.xlu0 %v660
      %v662 = vpop.xlane.xlu0 %661
      %v663 = vsel %vm215, %v627, 0.0
      %664 = vadd.xlane.f32.xlu0 %v663
      %v665 = vpop.xlane.xlu0 %664
      %v666 = vsel %vm215, %v628, 0.0
      %667 = vadd.xlane.f32.xlu0 %v666
      %v668 = vpop.xlane.xlu0 %667
      %v669 = vsel %vm215, %v629, 0.0
      %670 = vadd.xlane.f32.xlu0 %v669
      %v671 = vpop.xlane.xlu0 %670
      %v672 = vsel %vm215, %v630, 0.0
      %673 = vadd.xlane.f32.xlu0 %v672
      %v674 = vpop.xlane.xlu0 %673
      %v675 = vsel %vm215, %v631, 0.0
      %676 = vadd.xlane.f32.xlu0 %v675
      %v677 = vpop.xlane.xlu0 %676
      %v678 = vsel %vm215, %v632, 0.0
      %679 = vadd.xlane.f32.xlu0 %v678
      %v680 = vpop.xlane.xlu0 %679
      %v681 = vsel %vm215, %v633, 0.0
      %682 = vadd.xlane.f32.xlu0 %v681
      %v683 = vpop.xlane.xlu0 %682
      %v684 = vsel %vm215, %v634, 0.0
      %685 = vadd.xlane.f32.xlu0 %v684
      %v686 = vpop.xlane.xlu0 %685
      %v687 = vsel %vm215, %v635, 0.0
      %688 = vadd.xlane.f32.xlu0 %v687
      %v689 = vpop.xlane.xlu0 %688
      %v690 = vsel %vm215, %v636, 0.0
      %691 = vadd.xlane.f32.xlu0 %v690
      %v692 = vpop.xlane.xlu0 %691
      %v693 = vsel %vm215, %v637, 0.0
      %694 = vadd.xlane.f32.xlu0 %v693
      %v695 = vpop.xlane.xlu0 %694
      %v696 = vsel %vm215, %v638, 0.0
      %697 = vadd.xlane.f32.xlu0 %v696
      %v698 = vpop.xlane.xlu0 %697
      %v699 = vsel %vm215, %v639, 0.0
      %700 = vadd.xlane.f32.xlu0 %v699
      %v701 = vpop.xlane.xlu0 %700
      %v702 = vsel %vm215, %v640, 0.0
      %703 = vadd.xlane.f32.xlu0 %v702
      %v704 = vpop.xlane.xlu0 %703
      %v705 = vsel %vm215, %v641, 0.0
      %706 = vadd.xlane.f32.xlu0 %v705
      %v707 = vpop.xlane.xlu0 %706
      %v708 = vsel %vm215, %v642, 0.0
      %709 = vadd.xlane.f32.xlu0 %v708
      %v710 = vpop.xlane.xlu0 %709
      %v711 = vsel %vm215, %v643, 0.0
      %712 = vadd.xlane.f32.xlu0 %v711
      %v713 = vpop.xlane.xlu0 %712
      %v714 = vsel %vm215, %v644, 0.0
      %715 = vadd.xlane.f32.xlu0 %v714
      %v716 = vpop.xlane.xlu0 %715
      %v717 = vsel %vm215, %v645, 0.0
      %718 = vadd.xlane.f32.xlu0 %v717
      %v719 = vpop.xlane.xlu0 %718
      %v720 = vsel %vm215, %v646, 0.0
      %721 = vadd.xlane.f32.xlu0 %v720
      %v722 = vpop.xlane.xlu0 %721
      %v723 = vsel %vm215, %v647, 0.0
      %724 = vadd.xlane.f32.xlu0 %v723
      %v725 = vpop.xlane.xlu0 %724
      %v726 = vsel %vm215, %v648, 0.0
      %727 = vadd.xlane.f32.xlu0 %v726
      %v728 = vpop.xlane.xlu0 %727
      %v729 = vsel %vm215, %v649, 0.0
      %730 = vadd.xlane.f32.xlu0 %v729
      %v731 = vpop.xlane.xlu0 %730
      %v732 = vsel %vm215, %v650, 0.0
      %733 = vadd.xlane.f32.xlu0 %v732
      %v734 = vpop.xlane.xlu0 %733
      %v735 = vsel %vm215, %v651, 0.0
      %736 = vadd.xlane.f32.xlu0 %v735
      %v737 = vpop.xlane.xlu0 %736
      %v738 = vsel %vm215, %v652, 0.0
      %739 = vadd.xlane.f32.xlu0 %v738
      %v740 = vpop.xlane.xlu0 %739
      %v741 = vsel %vm215, %v653, 0.0
      %742 = vadd.xlane.f32.xlu0 %v741
      %v743 = vpop.xlane.xlu0 %742
      %v744 = vsel %vm215, %v654, 0.0
      %745 = vadd.xlane.f32.xlu0 %v744
      %v746 = vpop.xlane.xlu0 %745
      %v747 = vsel %vm215, %v655, 0.0
      %748 = vadd.xlane.f32.xlu0 %v747
      %v749 = vpop.xlane.xlu0 %748
      %v750 = vsel %vm215, %v656, 0.0
      %751 = vadd.xlane.f32.xlu0 %v750
      %v752 = vpop.xlane.xlu0 %751
      %v753 = vmul.f32 %v659, %v592
      %v754 = vmul.f32 %v662, %v592
      %v755 = vmul.f32 %v665, %v592
      %v756 = vmul.f32 %v668, %v592
      %v757 = vmul.f32 %v671, %v592
      %v758 = vmul.f32 %v674, %v592
      %v759 = vmul.f32 %v677, %v592
      %v760 = vmul.f32 %v680, %v592
      %v761 = vmul.f32 %v683, %v592
      %v762 = vmul.f32 %v686, %v592
      %v763 = vmul.f32 %v689, %v592
      %v764 = vmul.f32 %v692, %v592
      %v765 = vmul.f32 %v695, %v592
      %v766 = vmul.f32 %v698, %v592
      %v767 = vmul.f32 %v701, %v592
      %v768 = vmul.f32 %v704, %v592
      %v769 = vmul.f32 %v707, %v592
      %v770 = vmul.f32 %v710, %v592
      %v771 = vmul.f32 %v713, %v592
      %v772 = vmul.f32 %v716, %v592
      %v773 = vmul.f32 %v719, %v592
      %v774 = vmul.f32 %v722, %v592
      %v775 = vmul.f32 %v725, %v592
      %v776 = vmul.f32 %v728, %v592
      %v777 = vmul.f32 %v731, %v592
      %v778 = vmul.f32 %v734, %v592
      %v779 = vmul.f32 %v737, %v592
      %v780 = vmul.f32 %v740, %v592
      %v781 = vmul.f32 %v743, %v592
      %v782 = vmul.f32 %v746, %v592
      %v783 = vmul.f32 %v749, %v592
      %v784 = vmul.f32 %v752, %v592
      %v785 = vmul.f32 %v593, %v593
      %v786 = vmul.f32 %v594, %v594
      %v787 = vmul.f32 %v595, %v595
      %v788 = vmul.f32 %v596, %v596
      %v789 = vmul.f32 %v597, %v597
      %v790 = vmul.f32 %v598, %v598
      %v791 = vmul.f32 %v599, %v599
      %v792 = vmul.f32 %v600, %v600
      %v793 = vmul.f32 %v601, %v601
      %v794 = vmul.f32 %v602, %v602
      %v795 = vmul.f32 %v603, %v603
      %v796 = vmul.f32 %v604, %v604
      %v797 = vmul.f32 %v605, %v605
      %v798 = vmul.f32 %v606, %v606
      %v799 = vmul.f32 %v607, %v607
      %v800 = vmul.f32 %v608, %v608
      %v801 = vmul.f32 %v609, %v609
      %v802 = vmul.f32 %v610, %v610
      %v803 = vmul.f32 %v611, %v611
      %v804 = vmul.f32 %v612, %v612
      %v805 = vmul.f32 %v613, %v613
      %v806 = vmul.f32 %v614, %v614
      %v807 = vmul.f32 %v615, %v615
      %v808 = vmul.f32 %v616, %v616
      %v809 = vmul.f32 %v617, %v617
      %v810 = vmul.f32 %v618, %v618
      %v811 = vmul.f32 %v619, %v619
      %v812 = vmul.f32 %v620, %v620
      %v813 = vmul.f32 %v621, %v621
      %v814 = vmul.f32 %v622, %v622
      %v815 = vmul.f32 %v623, %v623
      %v816 = vmul.f32 %v624, %v624
      %v817 = vsub.f32 %v753, %v785
      %v818 = vsub.f32 %v754, %v786
      %v819 = vsub.f32 %v755, %v787
      %v820 = vsub.f32 %v756, %v788
      %v821 = vsub.f32 %v757, %v789
      %v822 = vsub.f32 %v758, %v790
      %v823 = vsub.f32 %v759, %v791
      %v824 = vsub.f32 %v760, %v792
      %v825 = vsub.f32 %v761, %v793
      %v826 = vsub.f32 %v762, %v794
      %v827 = vsub.f32 %v763, %v795
      %v828 = vsub.f32 %v764, %v796
      %v829 = vsub.f32 %v765, %v797
      %v830 = vsub.f32 %v766, %v798
      %v831 = vsub.f32 %v767, %v799
      %v832 = vsub.f32 %v768, %v800
      %v833 = vsub.f32 %v769, %v801
      %v834 = vsub.f32 %v770, %v802
      %v835 = vsub.f32 %v771, %v803
      %v836 = vsub.f32 %v772, %v804
      %v837 = vsub.f32 %v773, %v805
      %v838 = vsub.f32 %v774, %v806
      %v839 = vsub.f32 %v775, %v807
      %v840 = vsub.f32 %v776, %v808
      %v841 = vsub.f32 %v777, %v809
      %v842 = vsub.f32 %v778, %v810
      %v843 = vsub.f32 %v779, %v811
      %v844 = vsub.f32 %v780, %v812
      %v845 = vsub.f32 %v781, %v813
      %v846 = vsub.f32 %v782, %v814
      %v847 = vsub.f32 %v783, %v815
      %v848 = vsub.f32 %v784, %v816
      %v849 = vmax.f32 %v817, 0.0
      %v850 = vmax.f32 %v818, 0.0
      %v851 = vmax.f32 %v819, 0.0
      %v852 = vmax.f32 %v820, 0.0
      %v853 = vmax.f32 %v821, 0.0
      %v854 = vmax.f32 %v822, 0.0
      %v855 = vmax.f32 %v823, 0.0
      %v856 = vmax.f32 %v824, 0.0
      %v857 = vmax.f32 %v825, 0.0
      %v858 = vmax.f32 %v826, 0.0
      %v859 = vmax.f32 %v827, 0.0
      %v860 = vmax.f32 %v828, 0.0
      %v861 = vmax.f32 %v829, 0.0
      %v862 = vmax.f32 %v830, 0.0
      %v863 = vmax.f32 %v831, 0.0
      %v864 = vmax.f32 %v832, 0.0
      %v865 = vmax.f32 %v833, 0.0
      %v866 = vmax.f32 %v834, 0.0
      %v867 = vmax.f32 %v835, 0.0
      %v868 = vmax.f32 %v836, 0.0
      %v869 = vmax.f32 %v837, 0.0
      %v870 = vmax.f32 %v838, 0.0
      %v871 = vmax.f32 %v839, 0.0
      %v872 = vmax.f32 %v840, 0.0
      %v873 = vmax.f32 %v841, 0.0
      %v874 = vmax.f32 %v842, 0.0
      %v875 = vmax.f32 %v843, 0.0
      %v876 = vmax.f32 %v844, 0.0
      %v877 = vmax.f32 %v845, 0.0
      %v878 = vmax.f32 %v846, 0.0
      %v879 = vmax.f32 %v847, 0.0
      %v880 = vmax.f32 %v848, 0.0
      %v881 = vsub.f32 %v458, %v593
      %v882 = vsub.f32 %v459, %v594
      %v883 = vsub.f32 %v460, %v595
      %v884 = vsub.f32 %v461, %v596
      %v885 = vsub.f32 %v462, %v597
      %v886 = vsub.f32 %v463, %v598
      %v887 = vsub.f32 %v464, %v599
      %v888 = vsub.f32 %v465, %v600
      %v889 = vsub.f32 %v466, %v601
      %v890 = vsub.f32 %v467, %v602
      %v891 = vsub.f32 %v468, %v603
      %v892 = vsub.f32 %v469, %v604
      %v893 = vsub.f32 %v470, %v605
      %v894 = vsub.f32 %v471, %v606
      %v895 = vsub.f32 %v472, %v607
      %v896 = vsub.f32 %v473, %v608
      %v897 = vsub.f32 %v474, %v609
      %v898 = vsub.f32 %v475, %v610
      %v899 = vsub.f32 %v476, %v611
      %v900 = vsub.f32 %v477, %v612
      %v901 = vsub.f32 %v478, %v613
      %v902 = vsub.f32 %v479, %v614
      %v903 = vsub.f32 %v480, %v615
      %v904 = vsub.f32 %v481, %v616
      %v905 = vsub.f32 %v482, %v617
      %v906 = vsub.f32 %v483, %v618
      %v907 = vsub.f32 %v484, %v619
      %v908 = vsub.f32 %v485, %v620
      %v909 = vsub.f32 %v486, %v621
      %v910 = vsub.f32 %v487, %v622
      %v911 = vsub.f32 %v488, %v623
      %v912 = vsub.f32 %v489, %v624
      %v913 = vadd.f32 %v849, 1e-05
      %v914 = vadd.f32 %v850, 1e-05
      %v915 = vadd.f32 %v851, 1e-05
      %v916 = vadd.f32 %v852, 1e-05
      %v917 = vadd.f32 %v853, 1e-05
      %v918 = vadd.f32 %v854, 1e-05
      %v919 = vadd.f32 %v855, 1e-05
      %v920 = vadd.f32 %v856, 1e-05
      %v921 = vadd.f32 %v857, 1e-05
      %v922 = vadd.f32 %v858, 1e-05
      %v923 = vadd.f32 %v859, 1e-05
      %v924 = vadd.f32 %v860, 1e-05
      %v925 = vadd.f32 %v861, 1e-05
      %v926 = vadd.f32 %v862, 1e-05
      %v927 = vadd.f32 %v863, 1e-05
      %v928 = vadd.f32 %v864, 1e-05
      %v929 = vadd.f32 %v865, 1e-05
      %v930 = vadd.f32 %v866, 1e-05
      %v931 = vadd.f32 %v867, 1e-05
      %v932 = vadd.f32 %v868, 1e-05
      %v933 = vadd.f32 %v869, 1e-05
      %v934 = vadd.f32 %v870, 1e-05
      %v935 = vadd.f32 %v871, 1e-05
      %v936 = vadd.f32 %v872, 1e-05
      %v937 = vadd.f32 %v873, 1e-05
      %v938 = vadd.f32 %v874, 1e-05
      %v939 = vadd.f32 %v875, 1e-05
      %v940 = vadd.f32 %v876, 1e-05
      %v941 = vadd.f32 %v877, 1e-05
      %v942 = vadd.f32 %v878, 1e-05
      %v943 = vadd.f32 %v879, 1e-05
      %v944 = vadd.f32 %v880, 1e-05
      %v945 = vrsqrt.pop %v913
      %v946 = vmul.f32 %v945, %v913
      %v947 = vmul.f32 %v946, %v945
      %v948 = vmul.f32 0.5, %v947
      %v949 = vsub.f32 1.5, %v948
      %v950 = vmul.f32 %v945, %v949
      %vm951 = vweird.f32 %v913
      %vm952 = vweird.f32 %v945
      %vm953 = vmor %vm951, %vm952
      %v954 = vsel %vm953, %v945, %v950
      %v955 = vrsqrt.pop %v914
      %v956 = vmul.f32 %v955, %v914
      %v957 = vmul.f32 %v956, %v955
      %v958 = vmul.f32 0.5, %v957
      %v959 = vsub.f32 1.5, %v958
      %v960 = vmul.f32 %v955, %v959
      %vm961 = vweird.f32 %v914
      %vm962 = vweird.f32 %v955
      %vm963 = vmor %vm961, %vm962
      %v964 = vsel %vm963, %v955, %v960
      %v965 = vrsqrt.pop %v915
      %v966 = vmul.f32 %v965, %v915
      %v967 = vmul.f32 %v966, %v965
      %v968 = vmul.f32 0.5, %v967
      %v969 = vsub.f32 1.5, %v968
      %v970 = vmul.f32 %v965, %v969
      %vm971 = vweird.f32 %v915
      %vm972 = vweird.f32 %v965
      %vm973 = vmor %vm971, %vm972
      %v974 = vsel %vm973, %v965, %v970
      %v975 = vrsqrt.pop %v916
      %v976 = vmul.f32 %v975, %v916
      %v977 = vmul.f32 %v976, %v975
      %v978 = vmul.f32 0.5, %v977
      %v979 = vsub.f32 1.5, %v978
      %v980 = vmul.f32 %v975, %v979
      %vm981 = vweird.f32 %v916
      %vm982 = vweird.f32 %v975
      %vm983 = vmor %vm981, %vm982
      %v984 = vsel %vm983, %v975, %v980
      %v985 = vrsqrt.pop %v917
      %v986 = vmul.f32 %v985, %v917
      %v987 = vmul.f32 %v986, %v985
      %v988 = vmul.f32 0.5, %v987
      %v989 = vsub.f32 1.5, %v988
      %v990 = vmul.f32 %v985, %v989
      %vm991 = vweird.f32 %v917
      %vm992 = vweird.f32 %v985
      %vm993 = vmor %vm991, %vm992
      %v994 = vsel %vm993, %v985, %v990
      %v995 = vrsqrt.pop %v918
      %v996 = vmul.f32 %v995, %v918
      %v997 = vmul.f32 %v996, %v995
      %v998 = vmul.f32 0.5, %v997
      %v999 = vsub.f32 1.5, %v998
      %v1000 = vmul.f32 %v995, %v999
      %vm1001 = vweird.f32 %v918
      %vm1002 = vweird.f32 %v995
      %vm1003 = vmor %vm1001, %vm1002
      %v1004 = vsel %vm1003, %v995, %v1000
      %v1005 = vrsqrt.pop %v919
      %v1006 = vmul.f32 %v1005, %v919
      %v1007 = vmul.f32 %v1006, %v1005
      %v1008 = vmul.f32 0.5, %v1007
      %v1009 = vsub.f32 1.5, %v1008
      %v1010 = vmul.f32 %v1005, %v1009
      %vm1011 = vweird.f32 %v919
      %vm1012 = vweird.f32 %v1005
      %vm1013 = vmor %vm1011, %vm1012
      %v1014 = vsel %vm1013, %v1005, %v1010
      %v1015 = vrsqrt.pop %v920
      %v1016 = vmul.f32 %v1015, %v920
      %v1017 = vmul.f32 %v1016, %v1015
      %v1018 = vmul.f32 0.5, %v1017
      %v1019 = vsub.f32 1.5, %v1018
      %v1020 = vmul.f32 %v1015, %v1019
      %vm1021 = vweird.f32 %v920
      %vm1022 = vweird.f32 %v1015
      %vm1023 = vmor %vm1021, %vm1022
      %v1024 = vsel %vm1023, %v1015, %v1020
      %v1025 = vrsqrt.pop %v921
      %v1026 = vmul.f32 %v1025, %v921
      %v1027 = vmul.f32 %v1026, %v1025
      %v1028 = vmul.f32 0.5, %v1027
      %v1029 = vsub.f32 1.5, %v1028
      %v1030 = vmul.f32 %v1025, %v1029
      %vm1031 = vweird.f32 %v921
      %vm1032 = vweird.f32 %v1025
      %vm1033 = vmor %vm1031, %vm1032
      %v1034 = vsel %vm1033, %v1025, %v1030
      %v1035 = vrsqrt.pop %v922
      %v1036 = vmul.f32 %v1035, %v922
      %v1037 = vmul.f32 %v1036, %v1035
      %v1038 = vmul.f32 0.5, %v1037
      %v1039 = vsub.f32 1.5, %v1038
      %v1040 = vmul.f32 %v1035, %v1039
      %vm1041 = vweird.f32 %v922
      %vm1042 = vweird.f32 %v1035
      %vm1043 = vmor %vm1041, %vm1042
      %v1044 = vsel %vm1043, %v1035, %v1040
      %v1045 = vrsqrt.pop %v923
      %v1046 = vmul.f32 %v1045, %v923
      %v1047 = vmul.f32 %v1046, %v1045
      %v1048 = vmul.f32 0.5, %v1047
      %v1049 = vsub.f32 1.5, %v1048
      %v1050 = vmul.f32 %v1045, %v1049
      %vm1051 = vweird.f32 %v923
      %vm1052 = vweird.f32 %v1045
      %vm1053 = vmor %vm1051, %vm1052
      %v1054 = vsel %vm1053, %v1045, %v1050
      %v1055 = vrsqrt.pop %v924
      %v1056 = vmul.f32 %v1055, %v924
      %v1057 = vmul.f32 %v1056, %v1055
      %v1058 = vmul.f32 0.5, %v1057
      %v1059 = vsub.f32 1.5, %v1058
      %v1060 = vmul.f32 %v1055, %v1059
      %vm1061 = vweird.f32 %v924
      %vm1062 = vweird.f32 %v1055
      %vm1063 = vmor %vm1061, %vm1062
      %v1064 = vsel %vm1063, %v1055, %v1060
      %v1065 = vrsqrt.pop %v925
      %v1066 = vmul.f32 %v1065, %v925
      %v1067 = vmul.f32 %v1066, %v1065
      %v1068 = vmul.f32 0.5, %v1067
      %v1069 = vsub.f32 1.5, %v1068
      %v1070 = vmul.f32 %v1065, %v1069
      %vm1071 = vweird.f32 %v925
      %vm1072 = vweird.f32 %v1065
      %vm1073 = vmor %vm1071, %vm1072
      %v1074 = vsel %vm1073, %v1065, %v1070
      %v1075 = vrsqrt.pop %v926
      %v1076 = vmul.f32 %v1075, %v926
      %v1077 = vmul.f32 %v1076, %v1075
      %v1078 = vmul.f32 0.5, %v1077
      %v1079 = vsub.f32 1.5, %v1078
      %v1080 = vmul.f32 %v1075, %v1079
      %vm1081 = vweird.f32 %v926
      %vm1082 = vweird.f32 %v1075
      %vm1083 = vmor %vm1081, %vm1082
      %v1084 = vsel %vm1083, %v1075, %v1080
      %v1085 = vrsqrt.pop %v927
      %v1086 = vmul.f32 %v1085, %v927
      %v1087 = vmul.f32 %v1086, %v1085
      %v1088 = vmul.f32 0.5, %v1087
      %v1089 = vsub.f32 1.5, %v1088
      %v1090 = vmul.f32 %v1085, %v1089
      %vm1091 = vweird.f32 %v927
      %vm1092 = vweird.f32 %v1085
      %vm1093 = vmor %vm1091, %vm1092
      %v1094 = vsel %vm1093, %v1085, %v1090
      %v1095 = vrsqrt.pop %v928
      %v1096 = vmul.f32 %v1095, %v928
      %v1097 = vmul.f32 %v1096, %v1095
      %v1098 = vmul.f32 0.5, %v1097
      %v1099 = vsub.f32 1.5, %v1098
      %v1100 = vmul.f32 %v1095, %v1099
      %vm1101 = vweird.f32 %v928
      %vm1102 = vweird.f32 %v1095
      %vm1103 = vmor %vm1101, %vm1102
      %v1104 = vsel %vm1103, %v1095, %v1100
      %v1105 = vrsqrt.pop %v929
      %v1106 = vmul.f32 %v1105, %v929
      %v1107 = vmul.f32 %v1106, %v1105
      %v1108 = vmul.f32 0.5, %v1107
      %v1109 = vsub.f32 1.5, %v1108
      %v1110 = vmul.f32 %v1105, %v1109
      %vm1111 = vweird.f32 %v929
      %vm1112 = vweird.f32 %v1105
      %vm1113 = vmor %vm1111, %vm1112
      %v1114 = vsel %vm1113, %v1105, %v1110
      %v1115 = vrsqrt.pop %v930
      %v1116 = vmul.f32 %v1115, %v930
      %v1117 = vmul.f32 %v1116, %v1115
      %v1118 = vmul.f32 0.5, %v1117
      %v1119 = vsub.f32 1.5, %v1118
      %v1120 = vmul.f32 %v1115, %v1119
      %vm1121 = vweird.f32 %v930
      %vm1122 = vweird.f32 %v1115
      %vm1123 = vmor %vm1121, %vm1122
      %v1124 = vsel %vm1123, %v1115, %v1120
      %v1125 = vrsqrt.pop %v931
      %v1126 = vmul.f32 %v1125, %v931
      %v1127 = vmul.f32 %v1126, %v1125
      %v1128 = vmul.f32 0.5, %v1127
      %v1129 = vsub.f32 1.5, %v1128
      %v1130 = vmul.f32 %v1125, %v1129
      %vm1131 = vweird.f32 %v931
      %vm1132 = vweird.f32 %v1125
      %vm1133 = vmor %vm1131, %vm1132
      %v1134 = vsel %vm1133, %v1125, %v1130
      %v1135 = vrsqrt.pop %v932
      %v1136 = vmul.f32 %v1135, %v932
      %v1137 = vmul.f32 %v1136, %v1135
      %v1138 = vmul.f32 0.5, %v1137
      %v1139 = vsub.f32 1.5, %v1138
      %v1140 = vmul.f32 %v1135, %v1139
      %vm1141 = vweird.f32 %v932
      %vm1142 = vweird.f32 %v1135
      %vm1143 = vmor %vm1141, %vm1142
      %v1144 = vsel %vm1143, %v1135, %v1140
      %v1145 = vrsqrt.pop %v933
      %v1146 = vmul.f32 %v1145, %v933
      %v1147 = vmul.f32 %v1146, %v1145
      %v1148 = vmul.f32 0.5, %v1147
      %v1149 = vsub.f32 1.5, %v1148
      %v1150 = vmul.f32 %v1145, %v1149
      %vm1151 = vweird.f32 %v933
      %vm1152 = vweird.f32 %v1145
      %vm1153 = vmor %vm1151, %vm1152
      %v1154 = vsel %vm1153, %v1145, %v1150
      %v1155 = vrsqrt.pop %v934
      %v1156 = vmul.f32 %v1155, %v934
      %v1157 = vmul.f32 %v1156, %v1155
      %v1158 = vmul.f32 0.5, %v1157
      %v1159 = vsub.f32 1.5, %v1158
      %v1160 = vmul.f32 %v1155, %v1159
      %vm1161 = vweird.f32 %v934
      %vm1162 = vweird.f32 %v1155
      %vm1163 = vmor %vm1161, %vm1162
      %v1164 = vsel %vm1163, %v1155, %v1160
      %v1165 = vrsqrt.pop %v935
      %v1166 = vmul.f32 %v1165, %v935
      %v1167 = vmul.f32 %v1166, %v1165
      %v1168 = vmul.f32 0.5, %v1167
      %v1169 = vsub.f32 1.5, %v1168
      %v1170 = vmul.f32 %v1165, %v1169
      %vm1171 = vweird.f32 %v935
      %vm1172 = vweird.f32 %v1165
      %vm1173 = vmor %vm1171, %vm1172
      %v1174 = vsel %vm1173, %v1165, %v1170
      %v1175 = vrsqrt.pop %v936
      %v1176 = vmul.f32 %v1175, %v936
      %v1177 = vmul.f32 %v1176, %v1175
      %v1178 = vmul.f32 0.5, %v1177
      %v1179 = vsub.f32 1.5, %v1178
      %v1180 = vmul.f32 %v1175, %v1179
      %vm1181 = vweird.f32 %v936
      %vm1182 = vweird.f32 %v1175
      %vm1183 = vmor %vm1181, %vm1182
      %v1184 = vsel %vm1183, %v1175, %v1180
      %v1185 = vrsqrt.pop %v937
      %v1186 = vmul.f32 %v1185, %v937
      %v1187 = vmul.f32 %v1186, %v1185
      %v1188 = vmul.f32 0.5, %v1187
      %v1189 = vsub.f32 1.5, %v1188
      %v1190 = vmul.f32 %v1185, %v1189
      %vm1191 = vweird.f32 %v937
      %vm1192 = vweird.f32 %v1185
      %vm1193 = vmor %vm1191, %vm1192
      %v1194 = vsel %vm1193, %v1185, %v1190
      %v1195 = vrsqrt.pop %v938
      %v1196 = vmul.f32 %v1195, %v938
      %v1197 = vmul.f32 %v1196, %v1195
      %v1198 = vmul.f32 0.5, %v1197
      %v1199 = vsub.f32 1.5, %v1198
      %v1200 = vmul.f32 %v1195, %v1199
      %vm1201 = vweird.f32 %v938
      %vm1202 = vweird.f32 %v1195
      %vm1203 = vmor %vm1201, %vm1202
      %v1204 = vsel %vm1203, %v1195, %v1200
      %v1205 = vrsqrt.pop %v939
      %v1206 = vmul.f32 %v1205, %v939
      %v1207 = vmul.f32 %v1206, %v1205
      %v1208 = vmul.f32 0.5, %v1207
      %v1209 = vsub.f32 1.5, %v1208
      %v1210 = vmul.f32 %v1205, %v1209
      %vm1211 = vweird.f32 %v939
      %vm1212 = vweird.f32 %v1205
      %vm1213 = vmor %vm1211, %vm1212
      %v1214 = vsel %vm1213, %v1205, %v1210
      %v1215 = vrsqrt.pop %v940
      %v1216 = vmul.f32 %v1215, %v940
      %v1217 = vmul.f32 %v1216, %v1215
      %v1218 = vmul.f32 0.5, %v1217
      %v1219 = vsub.f32 1.5, %v1218
      %v1220 = vmul.f32 %v1215, %v1219
      %vm1221 = vweird.f32 %v940
      %vm1222 = vweird.f32 %v1215
      %vm1223 = vmor %vm1221, %vm1222
      %v1224 = vsel %vm1223, %v1215, %v1220
      %v1225 = vrsqrt.pop %v941
      %v1226 = vmul.f32 %v1225, %v941
      %v1227 = vmul.f32 %v1226, %v1225
      %v1228 = vmul.f32 0.5, %v1227
      %v1229 = vsub.f32 1.5, %v1228
      %v1230 = vmul.f32 %v1225, %v1229
      %vm1231 = vweird.f32 %v941
      %vm1232 = vweird.f32 %v1225
      %vm1233 = vmor %vm1231, %vm1232
      %v1234 = vsel %vm1233, %v1225, %v1230
      %v1235 = vrsqrt.pop %v942
      %v1236 = vmul.f32 %v1235, %v942
      %v1237 = vmul.f32 %v1236, %v1235
      %v1238 = vmul.f32 0.5, %v1237
      %v1239 = vsub.f32 1.5, %v1238
      %v1240 = vmul.f32 %v1235, %v1239
      %vm1241 = vweird.f32 %v942
      %vm1242 = vweird.f32 %v1235
      %vm1243 = vmor %vm1241, %vm1242
      %v1244 = vsel %vm1243, %v1235, %v1240
      %v1245 = vrsqrt.pop %v943
      %v1246 = vmul.f32 %v1245, %v943
      %v1247 = vmul.f32 %v1246, %v1245
      %v1248 = vmul.f32 0.5, %v1247
      %v1249 = vsub.f32 1.5, %v1248
      %v1250 = vmul.f32 %v1245, %v1249
      %vm1251 = vweird.f32 %v943
      %vm1252 = vweird.f32 %v1245
      %vm1253 = vmor %vm1251, %vm1252
      %v1254 = vsel %vm1253, %v1245, %v1250
      %v1255 = vrsqrt.pop %v944
      %v1256 = vmul.f32 %v1255, %v944
      %v1257 = vmul.f32 %v1256, %v1255
      %v1258 = vmul.f32 0.5, %v1257
      %v1259 = vsub.f32 1.5, %v1258
      %v1260 = vmul.f32 %v1255, %v1259
      %vm1261 = vweird.f32 %v944
      %vm1262 = vweird.f32 %v1255
      %vm1263 = vmor %vm1261, %vm1262
      %v1264 = vsel %vm1263, %v1255, %v1260
      %v1265 = vmul.f32 %v881, %v954
      %v1266 = vmul.f32 %v882, %v964
      %v1267 = vmul.f32 %v883, %v974
      %v1268 = vmul.f32 %v884, %v984
      %v1269 = vmul.f32 %v885, %v994
      %v1270 = vmul.f32 %v886, %v1004
      %v1271 = vmul.f32 %v887, %v1014
      %v1272 = vmul.f32 %v888, %v1024
      %v1273 = vmul.f32 %v889, %v1034
      %v1274 = vmul.f32 %v890, %v1044
      %v1275 = vmul.f32 %v891, %v1054
      %v1276 = vmul.f32 %v892, %v1064
      %v1277 = vmul.f32 %v893, %v1074
      %v1278 = vmul.f32 %v894, %v1084
      %v1279 = vmul.f32 %v895, %v1094
      %v1280 = vmul.f32 %v896, %v1104
      %v1281 = vmul.f32 %v897, %v1114
      %v1282 = vmul.f32 %v898, %v1124
      %v1283 = vmul.f32 %v899, %v1134
      %v1284 = vmul.f32 %v900, %v1144
      %v1285 = vmul.f32 %v901, %v1154
      %v1286 = vmul.f32 %v902, %v1164
      %v1287 = vmul.f32 %v903, %v1174
      %v1288 = vmul.f32 %v904, %v1184
      %v1289 = vmul.f32 %v905, %v1194
      %v1290 = vmul.f32 %v906, %v1204
      %v1291 = vmul.f32 %v907, %v1214
      %v1292 = vmul.f32 %v908, %v1224
      %v1293 = vmul.f32 %v909, %v1234
      %v1294 = vmul.f32 %v910, %v1244
      %v1295 = vmul.f32 %v911, %v1254
      %v1296 = vmul.f32 %v912, %v1264
      %v1297 = vperm.slane %v206, 1
      %v1298 = vmul.f32 %v1265, %v1297
      %v1299 = vmul.f32 %v1266, %v1297
      %v1300 = vmul.f32 %v1267, %v1297
      %v1301 = vmul.f32 %v1268, %v1297
      %v1302 = vmul.f32 %v1269, %v1297
      %v1303 = vmul.f32 %v1270, %v1297
      %v1304 = vmul.f32 %v1271, %v1297
      %v1305 = vmul.f32 %v1272, %v1297
      %v1306 = vmul.f32 %v1273, %v1297
      %v1307 = vmul.f32 %v1274, %v1297
      %v1308 = vmul.f32 %v1275, %v1297
      %v1309 = vmul.f32 %v1276, %v1297
      %v1310 = vmul.f32 %v1277, %v1297
      %v1311 = vmul.f32 %v1278, %v1297
      %v1312 = vmul.f32 %v1279, %v1297
      %v1313 = vmul.f32 %v1280, %v1297
      %v1314 = vmul.f32 %v1281, %v1297
      %v1315 = vmul.f32 %v1282, %v1297
      %v1316 = vmul.f32 %v1283, %v1297
      %v1317 = vmul.f32 %v1284, %v1297
      %v1318 = vmul.f32 %v1285, %v1297
      %v1319 = vmul.f32 %v1286, %v1297
      %v1320 = vmul.f32 %v1287, %v1297
      %v1321 = vmul.f32 %v1288, %v1297
      %v1322 = vmul.f32 %v1289, %v1297
      %v1323 = vmul.f32 %v1290, %v1297
      %v1324 = vmul.f32 %v1291, %v1297
      %v1325 = vmul.f32 %v1292, %v1297
      %v1326 = vmul.f32 %v1293, %v1297
      %v1327 = vmul.f32 %v1294, %v1297
      %v1328 = vmul.f32 %v1295, %v1297
      %v1329 = vmul.f32 %v1296, %v1297
      %v1330 = vperm.slane %v206, 2
      %v1331 = vadd.f32 %v1298, %v1330
      %v1332 = vadd.f32 %v1299, %v1330
      %v1333 = vadd.f32 %v1300, %v1330
      %v1334 = vadd.f32 %v1301, %v1330
      %v1335 = vadd.f32 %v1302, %v1330
      %v1336 = vadd.f32 %v1303, %v1330
      %v1337 = vadd.f32 %v1304, %v1330
      %v1338 = vadd.f32 %v1305, %v1330
      %v1339 = vadd.f32 %v1306, %v1330
      %v1340 = vadd.f32 %v1307, %v1330
      %v1341 = vadd.f32 %v1308, %v1330
      %v1342 = vadd.f32 %v1309, %v1330
      %v1343 = vadd.f32 %v1310, %v1330
      %v1344 = vadd.f32 %v1311, %v1330
      %v1345 = vadd.f32 %v1312, %v1330
      %v1346 = vadd.f32 %v1313, %v1330
      %v1347 = vadd.f32 %v1314, %v1330
      %v1348 = vadd.f32 %v1315, %v1330
      %v1349 = vadd.f32 %v1316, %v1330
      %v1350 = vadd.f32 %v1317, %v1330
      %v1351 = vadd.f32 %v1318, %v1330
      %v1352 = vadd.f32 %v1319, %v1330
      %v1353 = vadd.f32 %v1320, %v1330
      %v1354 = vadd.f32 %v1321, %v1330
      %v1355 = vadd.f32 %v1322, %v1330
      %v1356 = vadd.f32 %v1323, %v1330
      %v1357 = vadd.f32 %v1324, %v1330
      %v1358 = vadd.f32 %v1325, %v1330
      %v1359 = vadd.f32 %v1326, %v1330
      %v1360 = vadd.f32 %v1327, %v1330
      %v1361 = vadd.f32 %v1328, %v1330
      %v1362 = vadd.f32 %v1329, %v1330
      %1363 = vst.msk [vmem:[%s172] sm:$0xff] %vm215, %v1331
      %1364 = vst.msk [vmem:[%s172 + $0x8] sm:$0xff] %vm215, %v1332
      %1365 = vst.msk [vmem:[%s172 + $0x10] sm:$0xff] %vm215, %v1333
      %1366 = vst.msk [vmem:[%s172 + $0x18] sm:$0xff] %vm215, %v1334
      %1367 = vst.msk [vmem:[%s172 + $0x20] sm:$0xff] %vm215, %v1335
      %1368 = vst.msk [vmem:[%s172 + $0x28] sm:$0xff] %vm215, %v1336
      %1369 = vst.msk [vmem:[%s172 + $0x30] sm:$0xff] %vm215, %v1337
      %1370 = vst.msk [vmem:[%s172 + $0x38] sm:$0xff] %vm215, %v1338
      %1371 = vst.msk [vmem:[%s172 + $0x40] sm:$0xff] %vm215, %v1339
      %1372 = vst.msk [vmem:[%s172 + $0x48] sm:$0xff] %vm215, %v1340
      %1373 = vst.msk [vmem:[%s172 + $0x50] sm:$0xff] %vm215, %v1341
      %1374 = vst.msk [vmem:[%s172 + $0x58] sm:$0xff] %vm215, %v1342
      %1375 = vst.msk [vmem:[%s172 + $0x60] sm:$0xff] %vm215, %v1343
      %1376 = vst.msk [vmem:[%s172 + $0x68] sm:$0xff] %vm215, %v1344
      %1377 = vst.msk [vmem:[%s172 + $0x70] sm:$0xff] %vm215, %v1345
      %1378 = vst.msk [vmem:[%s172 + $0x78] sm:$0xff] %vm215, %v1346
      %1379 = vst.msk [vmem:[%s172 + $0x80] sm:$0xff] %vm215, %v1347
      %1380 = vst.msk [vmem:[%s172 + $0x88] sm:$0xff] %vm215, %v1348
      %1381 = vst.msk [vmem:[%s172 + $0x90] sm:$0xff] %vm215, %v1349
      %1382 = vst.msk [vmem:[%s172 + $0x98] sm:$0xff] %vm215, %v1350
      %1383 = vst.msk [vmem:[%s172 + $0xa0] sm:$0xff] %vm215, %v1351
      %1384 = vst.msk [vmem:[%s172 + $0xa8] sm:$0xff] %vm215, %v1352
      %1385 = vst.msk [vmem:[%s172 + $0xb0] sm:$0xff] %vm215, %v1353
      %1386 = vst.msk [vmem:[%s172 + $0xb8] sm:$0xff] %vm215, %v1354
      %1387 = vst.msk [vmem:[%s172 + $0xc0] sm:$0xff] %vm215, %v1355
      %1388 = vst.msk [vmem:[%s172 + $0xc8] sm:$0xff] %vm215, %v1356
      %1389 = vst.msk [vmem:[%s172 + $0xd0] sm:$0xff] %vm215, %v1357
      %1390 = vst.msk [vmem:[%s172 + $0xd8] sm:$0xff] %vm215, %v1358
      %1391 = vst.msk [vmem:[%s172 + $0xe0] sm:$0xff] %vm215, %v1359
      %1392 = vst.msk [vmem:[%s172 + $0xe8] sm:$0xff] %vm215, %v1360
      %1393 = vst.msk [vmem:[%s172 + $0xf0] sm:$0xff] %vm215, %v1361
      %1394 = vst.msk [vmem:[%s172 + $0xf8] sm:$0xff] %vm215, %v1362
      %s1395 = smul.u32 32, %s14
      %p1396 = scmp.lt.s32.totalorder %s1395, 63
      %s1397 = scalar_select %p1396, %s1395, 63
      %s1398 = smul.addr %s1397, 8
      %s1399 = scalar_lea.vmem %s3, %s1398
      // Predicated region
      $region33: #{tpu_custom_call.1} parent=31 // pred_check
        %p1400 = pneg %p100
      $region34: #{tpu_custom_call.1} parent=31 // pred_check_branch
        %1402 = sbr.rel (%p1400) target = $region36
      $region35: #{tpu_custom_call.1} parent=31 // pred_region
        %s1403 = smul.u32 32, %s14
      $region36: #{tpu_custom_call.1} parent=31 // pred_fallthru
        _
    $region32: #{tpu_custom_call.1} parent=5 // pred_fallthru
      _
    %p1404 = scmp.le.s32.totalorder 2, %s9
    // Predicated region
    $region37: #{tpu_custom_call.1} parent=5 // pred_check
      %p1405 = pneg %p1404
    $region38: #{tpu_custom_call.1} parent=5 // pred_check_branch
      %1407 = sbr.rel (%p1405) target = $region40
    $region39: #{tpu_custom_call.1} parent=5 // pred_region
      %s1408 = ssub.s32 %s9, 2
      // Predicated region
      $region41: #{tpu_custom_call.1} parent=39 // pred_check
        %p1409 = pneg %p106
      $region42: #{tpu_custom_call.1} parent=39 // pred_check_branch
        %1411 = sbr.rel (%p1409) target = $region44
      $region43: #{tpu_custom_call.1} parent=39 // pred_region
        %s1412 = smul.u32 32, %s15
        %p1413 = scmp.lt.s32.totalorder %s1412, 63
        %s1414 = scalar_select %p1413, %s1412, 63
        %s1415 = smul.addr %s1414, 8
        %s1416 = scalar_lea.vmem %s3, %s1415
      $region44: #{tpu_custom_call.1} parent=39 // pred_fallthru
        _
    $region40: #{tpu_custom_call.1} parent=5 // pred_fallthru
      _
  $region6: #{tpu_custom_call.1} parent=0 // loop_footer
    %s13 = sadd.s32 1, %s9
  $region7: #{tpu_custom_call.1} parent=0 // loop_footer_branch
    %8 = sbr.rel target = $region3
  $region8: #{tpu_custom_call.1} parent=0 // loop_exit
    _

</llo_original>
